<compile_context>
chip_gen: v6e
topology: v6e:2x2x1
jax: 0.10.0
libtpu: 0.0.40
codegen_flags: <defaults>
</compile_context>

<pallas_src>
import functools

import jax
import jax.numpy as jnp
from jax.experimental import pallas as pl
from jax.experimental.pallas import tpu as pltpu


def _joints_mse_kernel(*refs, scale, weighted, rows_tile, total_rows,
                       need_mask):
    if weighted:
        pred_ref, gt_ref, w_ref, out_ref, acc_ref = refs
    else:
        pred_ref, gt_ref, out_ref, acc_ref = refs
        w_ref = None

    i = pl.program_id(1)          # row-tile index within this split

    @pl.when(i == 0)
    def _init():
        acc_ref[...] = jnp.zeros_like(acc_ref)

    # Cast per tile (inputs may be bf16/fp16); all math / accumulation in f32.
    d = pred_ref[...].astype(jnp.float32) - gt_ref[...].astype(jnp.float32)
    sq = d * d
    if weighted:
        sq = sq * w_ref[...]      # (rows_tile, 1) broadcast over lanes (VPU)

    if need_mask:
        # Zero rows beyond the real array (partial last tile / clamped
        # overhang tile).  Mask AFTER the multiplies so stale VMEM garbage
        # (possibly inf/NaN) can never leak into the sum.
        s = pl.program_id(0)
        row0 = (i * pl.num_programs(0) + s) * rows_tile
        rid = jax.lax.broadcasted_iota(jnp.int32, (rows_tile, 1), 0) + row0
        sq = jnp.where(rid < total_rows, sq, 0.0)

    lane = sq.shape[-1]
    if rows_tile % 8 == 0:
        # Layout-preserving fold onto one (8, lane) slab: pure VPU adds,
        # keeps the persistent accumulator a single sublane-group wide.
        red = sq.reshape(rows_tile // 8, 8, lane).sum(axis=0)
    else:
        # Only reachable when the whole problem is a single (R, HW) tile with
        # R % 8 != 0; one small cross-sublane reduce is fine there.
        red = jnp.sum(sq, axis=0, keepdims=True)
    acc_ref[...] += red

    @pl.when(i == pl.num_programs(1) - 1)
    def _finalize():
        # Single cross-lane/sublane reduction per split; scalar goes to SMEM.
        out_ref[0, 0] = jnp.sum(acc_ref[...]) * scale


def joints_mse_loss_pallas(output, target, target_weight=None,
                           use_target_weight=True,
                           tile_bytes=4 * 1024 * 1024):
    """output, target: (B, J, H, W); target_weight: (B, J, 1) or None."""
    B, J, H, W = output.shape
    HW = H * W
    R = B * J
    N = R * HW
    itemsize = jnp.dtype(output.dtype).itemsize

    # Flattened 2-D views; contiguous reshape, NO dtype change in HBM.
    pred2 = output.reshape(R, HW)
    gt2 = target.reshape(R, HW)

    weighted = bool(use_target_weight) and target_weight is not None
    if weighted:
        w = target_weight.reshape(B, J).astype(jnp.float32)
        w2_j = jnp.sum(w * w, axis=0)                               # (J,)
        wcol = jnp.broadcast_to(w2_j[None, :], (B, J)).reshape(R, 1)
        scale = 0.5 / float(J * B * B * HW)
    else:
        # With w == 1 the per-joint weight collapses to B; fold it into scale.
        wcol = None
        scale = 0.5 / float(J * B * HW)

    # ---- tile selection --------------------------------------------------
    # Lane dim = full HW (lane-dense; always legal as the full array dim).
    # Row tile sized for ~tile_bytes in the *native* dtype, floored to the
    # sublane packing of that dtype so DMAs stay unmasked.  Non-divisible R
    # is handled by masking the partial last tile in-kernel.
    pack = max(8, 32 // max(itemsize, 1))          # 8 f32, 16 bf16, 32 int8
    row_bytes = HW * itemsize
    rows_budget = max(pack, (max(1, tile_bytes // row_bytes) // pack) * pack)

    if R <= rows_budget:
        rows_tile = R                              # single full-extent tile
        n_tiles = 1
    else:
        rows_tile = rows_budget
        n_tiles = -(-R // rows_tile)               # cdiv

    # Two independent partial sums so the leading "parallel" axis can shard
    # across v7x's two TensorCores (sequential / harmless on v5e & v6e).
    # NOTE: if xprof shows this running on a single v7x core, switch the
    # leading axis to pltpu.CORE_PARALLEL.
    nsplit = 2 if n_tiles >= 2 else 1
    n_rt_split = -(-n_tiles // nsplit)
    need_clamp = nsplit * n_rt_split > n_tiles     # odd tile count overhang
    need_mask = nsplit * n_rt_split * rows_tile > R
    t_last = n_tiles - 1

    def hm_map(s, i):
        t = i * nsplit + s                         # round-robin for balance
        if need_clamp:
            t = jnp.minimum(t, t_last)             # overhang -> re-read last
        return (t, 0)

    in_specs = [pl.BlockSpec((rows_tile, HW), hm_map),
                pl.BlockSpec((rows_tile, HW), hm_map)]
    args = [pred2, gt2]
    if weighted:
        in_specs.append(pl.BlockSpec((rows_tile, 1), hm_map))
        args.append(wcol)

    acc_rows = 8 if rows_tile % 8 == 0 else 1

    kernel = functools.partial(
        _joints_mse_kernel, scale=scale, weighted=weighted,
        rows_tile=rows_tile, total_rows=R, need_mask=need_mask)

    cost = pl.CostEstimate(
        flops=int(N) * (5 if weighted else 4),
        transcendentals=0,
        bytes_accessed=2 * int(N) * int(itemsize)
        + (R * 4 if weighted else 0) + nsplit * 4)

    partial_sums = pl.pallas_call(
        kernel,
        out_shape=jax.ShapeDtypeStruct((nsplit, 1), jnp.float32),
        grid=(nsplit, n_rt_split),
        in_specs=in_specs,
        out_specs=pl.BlockSpec((1, 1), lambda s, i: (s, 0),
                               memory_space=pltpu.SMEM),
        scratch_shapes=[pltpu.VMEM((acc_rows, HW), jnp.float32)],
        compiler_params=pltpu.CompilerParams(
            dimension_semantics=("parallel", "arbitrary"),
            vmem_limit_bytes=28 * 1024 * 1024),
        cost_estimate=cost,
    )(*args)

    return jnp.sum(partial_sums)


def joints_mse_loss_ref(output, target, target_weight=None):
    """Pure-JAX reference mirroring the PyTorch code (incl. its broadcast)."""
    B, J = output.shape[0], output.shape[1]
    pred = output.reshape(B, J, -1).astype(jnp.float32)
    gt = target.reshape(B, J, -1).astype(jnp.float32)
    loss = 0.0
    for idx in range(J):
        hp = pred[:, idx:idx + 1, :]      # (B, 1, HW)
        hg = gt[:, idx:idx + 1, :]
        if target_weight is None:
            loss = loss + 0.5 * jnp.mean((hp - hg) ** 2)
        else:
            w = target_weight[:, idx]     # (B, 1) -> broadcasts to (B, B, HW)
            loss = loss + 0.5 * jnp.mean((hp * w - hg * w) ** 2)
    return loss / J


if __name__ == "__main__":
    ks = jax.random.split(jax.random.PRNGKey(0), 12)

    # 1) Small baseline (weighted + unweighted), single-tile path.
    B, J, H, W = 2, 4, 16, 16
    out1 = jax.random.normal(ks[0], (B, J, H, W), dtype=jnp.float32)
    tgt1 = jax.random.normal(ks[1], (B, J, H, W), dtype=jnp.float32)
    w1 = jax.random.uniform(ks[2], (B, J, 1), dtype=jnp.float32)

    got = jax.block_until_ready(joints_mse_loss_pallas(out1, tgt1, w1, True))
    ref = joints_mse_loss_ref(out1, tgt1, w1)
    assert jnp.allclose(got, ref, rtol=1e-5, atol=1e-6), (got, ref)

    got = jax.block_until_ready(joints_mse_loss_pallas(out1, tgt1, w1, False))
    ref = joints_mse_loss_ref(out1, tgt1, None)
    assert jnp.allclose(got, ref, rtol=1e-5, atol=1e-6), (got, ref)

    # 2) Realistic joint count (J=17): odd tile count -> partial last tile,
    #    clamped overhang tile and the 2-way split are all exercised (tile
    #    budget shrunk so this small test still tiles).
    B, J, H, W = 2, 17, 32, 32
    out2 = jax.random.normal(ks[3], (B, J, H, W), dtype=jnp.float32)
    tgt2 = jax.random.normal(ks[4], (B, J, H, W), dtype=jnp.float32)
    w2 = jax.random.uniform(ks[5], (B, J, 1), dtype=jnp.float32)

    got = jax.block_until_ready(
        joints_mse_loss_pallas(out2, tgt2, w2, True, tile_bytes=64 * 1024))
    ref = joints_mse_loss_ref(out2, tgt2, w2)
    assert jnp.allclose(got, ref, rtol=1e-5, atol=1e-6), (got, ref)

    got = jax.block_until_ready(
        joints_mse_loss_pallas(out2, tgt2, None, True, tile_bytes=64 * 1024))
    ref = joints_mse_loss_ref(out2, tgt2, None)
    assert jnp.allclose(got, ref, rtol=1e-5, atol=1e-6), (got, ref)

    # 3) bf16 inputs, 16-row packed tiles, even 2-way split, in-kernel cast.
    B, J, H, W = 4, 8, 64, 64
    out3 = jax.random.normal(ks[6], (B, J, H, W), dtype=jnp.bfloat16)
    tgt3 = jax.random.normal(ks[7], (B, J, H, W), dtype=jnp.bfloat16)
    w3 = jax.random.uniform(ks[8], (B, J, 1), dtype=jnp.float32)

    got = jax.block_until_ready(
        joints_mse_loss_pallas(out3, tgt3, w3, True, tile_bytes=128 * 1024))
    ref = joints_mse_loss_ref(out3, tgt3, w3)
    assert jnp.allclose(got, ref, rtol=1e-4, atol=1e-6), (got, ref)

    # 4) R not a multiple of 8: single full-extent tile, (1, HW) accumulator.
    B, J, H, W = 2, 5, 16, 16
    out4 = jax.random.normal(ks[9], (B, J, H, W), dtype=jnp.float32)
    tgt4 = jax.random.normal(ks[10], (B, J, H, W), dtype=jnp.float32)
    w4 = jax.random.uniform(ks[11], (B, J, 1), dtype=jnp.float32)

    got = jax.block_until_ready(joints_mse_loss_pallas(out4, tgt4, w4, True))
    ref = joints_mse_loss_ref(out4, tgt4, w4)
    assert jnp.allclose(got, ref, rtol=1e-5, atol=1e-6), (got, ref)

    print("KERNEL_OK")
</pallas_src>

<mosaic_0001>
module attributes {stable_mosaic.version = 11 : i64} {
  func.func @_joints_mse_kernel(%arg0: i32, %arg1: i32, %arg2: memref<8x256xf32, #tpu.memory_space<vmem>>, %arg3: memref<8x256xf32, #tpu.memory_space<vmem>>, %arg4: memref<8x1xf32, #tpu.memory_space<vmem>>, %arg5: memref<1x1xf32, #tpu.memory_space<smem>>, %arg6: memref<8x256xf32, #tpu.memory_space<vmem>>) attributes {dimension_semantics = [#tpu.dimension_semantics<parallel>, #tpu.dimension_semantics<arbitrary>], iteration_bounds = array<i64: 1, 1>, scalar_prefetch = 0 : i64, scratch_operands = 1 : i64, tpu.core_type = #tpu.core_type<tc>, window_params = [{transform_indices = @transform_0, window_bounds = array<i64: 8, 256>}, {transform_indices = @transform_1, window_bounds = array<i64: 8, 256>}, {transform_indices = @transform_2, window_bounds = array<i64: 8, 1>}, {transform_indices = @transform_3, window_bounds = array<i64: 1, 1>}]} {
    %c0_i32 = arith.constant 0 : i32
    %0 = arith.cmpi eq, %arg1, %c0_i32 : i32
    %1 = arith.extui %0 : i1 to i32
    %c0_i32_0 = arith.constant 0 : i32
    %2 = arith.cmpi ne, %1, %c0_i32_0 : i32
    scf.if %2 {
      %cst_12 = arith.constant 0.000000e+00 : f32
      %18 = vector.broadcast %cst_12 : f32 to vector<8x256xf32>
      %c0_13 = arith.constant 0 : index
      %c0_14 = arith.constant 0 : index
      %19 = vector.load %arg6[%c0_13, %c0_14] : memref<8x256xf32, #tpu.memory_space<vmem>>, vector<8x256xf32>
      tpu.vector_store %arg6[%c0_13, %c0_14], %18 {strides = array<i32>} : memref<8x256xf32, #tpu.memory_space<vmem>>, vector<8x256xf32>,
    } else {
    }
    %c0 = arith.constant 0 : index
    %c0_1 = arith.constant 0 : index
    %3 = vector.load %arg2[%c0, %c0_1] : memref<8x256xf32, #tpu.memory_space<vmem>>, vector<8x256xf32>
    %c0_2 = arith.constant 0 : index
    %c0_3 = arith.constant 0 : index
    %4 = vector.load %arg3[%c0_2, %c0_3] : memref<8x256xf32, #tpu.memory_space<vmem>>, vector<8x256xf32>
    %5 = arith.subf %3, %4 : vector<8x256xf32>
    %6 = arith.mulf %5, %5 : vector<8x256xf32>
    %c0_4 = arith.constant 0 : index
    %c0_5 = arith.constant 0 : index
    %7 = vector.load %arg4[%c0_4, %c0_5] : memref<8x1xf32, #tpu.memory_space<vmem>>, vector<8x1xf32>
    %8 = vector.broadcast %7 : vector<8x1xf32> to vector<8x256xf32>
    %9 = arith.mulf %6, %8 : vector<8x256xf32>
    %10 = vector.shape_cast %9 : vector<8x256xf32> to vector<1x8x256xf32>
    %cst = arith.constant dense<0.000000e+00> : vector<8x256xf32>
    %11 = vector.multi_reduction <add>, %10, %cst [0] : vector<1x8x256xf32> to vector<8x256xf32>
    %c0_6 = arith.constant 0 : index
    %c0_7 = arith.constant 0 : index
    %12 = vector.load %arg6[%c0_6, %c0_7] : memref<8x256xf32, #tpu.memory_space<vmem>>, vector<8x256xf32>
    %13 = arith.addf %12, %11 : vector<8x256xf32>
    %c0_8 = arith.constant 0 : index
    %c0_9 = arith.constant 0 : index
    %14 = vector.load %arg6[%c0_8, %c0_9] : memref<8x256xf32, #tpu.memory_space<vmem>>, vector<8x256xf32>
    tpu.vector_store %arg6[%c0_8, %c0_9], %13 {strides = array<i32>} : memref<8x256xf32, #tpu.memory_space<vmem>>, vector<8x256xf32>,
    %c0_i32_10 = arith.constant 0 : i32
    %15 = arith.cmpi eq, %arg1, %c0_i32_10 : i32
    %16 = arith.extui %15 : i1 to i32
    %c0_i32_11 = arith.constant 0 : i32
    %17 = arith.cmpi ne, %16, %c0_i32_11 : i32
    scf.if %17 {
      %c0_12 = arith.constant 0 : index
      %c0_13 = arith.constant 0 : index
      %18 = vector.load %arg6[%c0_12, %c0_13] : memref<8x256xf32, #tpu.memory_space<vmem>>, vector<8x256xf32>
      %19 = vector.shape_cast %18 : vector<8x256xf32> to vector<1x8x256xf32>
      %cst_14 = arith.constant dense<0.000000e+00> : vector<1xf32>
      %20 = vector.multi_reduction <add>, %19, %cst_14 [1, 2] : vector<1x8x256xf32> to vector<1xf32>
      %21 = vector.shape_cast %20 : vector<1xf32> to vector<1x1x1xf32>
      %22 = vector.extract %21[0, 0, 0] : f32 from vector<1x1x1xf32>
      %cst_15 = arith.constant 1.22070313E-4 : f32
      %23 = arith.mulf %22, %cst_15 : f32
      %c0_16 = arith.constant 0 : index
      %c0_17 = arith.constant 0 : index
      %24 = memref.load %arg5[%c0_16, %c0_17] : memref<1x1xf32, #tpu.memory_space<smem>>
      memref.store %23, %arg5[%c0_16, %c0_17] : memref<1x1xf32, #tpu.memory_space<smem>>
    } else {
    }
    return
  }
  func.func @transform_0(%arg0: i32, %arg1: i32) -> (i32, i32) {
    %c1_i32 = arith.constant 1 : i32
    %0 = arith.muli %arg1, %c1_i32 : i32
    %1 = arith.addi %0, %arg0 : i32
    %c0_i32 = arith.constant 0 : i32
    %c0_i32_0 = arith.constant 0 : i32
    return %1, %c0_i32 : i32, i32
  }
  func.func @transform_1(%arg0: i32, %arg1: i32) -> (i32, i32) {
    %c1_i32 = arith.constant 1 : i32
    %0 = arith.muli %arg1, %c1_i32 : i32
    %1 = arith.addi %0, %arg0 : i32
    %c0_i32 = arith.constant 0 : i32
    %c0_i32_0 = arith.constant 0 : i32
    return %1, %c0_i32 : i32, i32
  }
  func.func @transform_2(%arg0: i32, %arg1: i32) -> (i32, i32) {
    %c1_i32 = arith.constant 1 : i32
    %0 = arith.muli %arg1, %c1_i32 : i32
    %1 = arith.addi %0, %arg0 : i32
    %c0_i32 = arith.constant 0 : i32
    %c0_i32_0 = arith.constant 0 : i32
    return %1, %c0_i32 : i32, i32
  }
  func.func @transform_3(%arg0: i32, %arg1: i32) -> (i32, i32) {
    %c0_i32 = arith.constant 0 : i32
    %c0_i32_0 = arith.constant 0 : i32
    return %arg0, %c0_i32 : i32, i32
  }
}

</mosaic_0001>

<llo_original>
// kernel: tpu_custom_call.1
$region0: #{tpu_custom_call.1}
  #allocation0 [shape = 'u32[]', space=smem, size = 0x4, offset = 0x4, fixed_abs, tag = 'smem constant byte address 0x4 - core index']
  #allocation1 [shape = 'u32[144,128]{1,0:T(1,128)}', space=vmem, size = 0x12000, scoped, tag = 'internal scratch']
  #allocation2 [shape = 'f32[8,256]{1,0:T(8,128)}', space=vmem, size = 0x2000, scoped, tag = 'scratch operand']
  %s0 = inlined_call_operand.hbm [shape: f32[8,256], index: 0, kind: input, shape index: {}]
  %s1 = inlined_call_operand.hbm [shape: f32[8,256], index: 1, kind: input, shape index: {}]
  %s2 = inlined_call_operand.vmem [shape: f32[8,1], index: 2, kind: input, shape index: {}]
  %s3 = inlined_call_operand.hbm [shape: f32[1,1], index: 3, kind: output, shape index: {}]
  %s4 = sld [smem:[#allocation0]]
  $region38: #{tpu_custom_call.1} parent=0
    _
  %s6 = ssub.s32 1, %s4
  %s7 = scalar_select 0, %s6, %s4
  $region1: #{tpu_custom_call.1} parent=0
    #allocation3 [shape = 'u8[8192]{0}', space=vmem, size = 0x2000, scoped, tag = 'input window, operand 0, single buffered']
    #allocation4 [shape = 's32[1]{0}', space=sflag, size = 0x4, scoped, tag = 'scoped memory for tpu_custom_call.1']
    #allocation5 [shape = 's32[1]{0}', space=sflag, size = 0x4, scoped, tag = 'scoped memory for tpu_custom_call.1']
    #allocation6 [shape = 'u8[8192]{0}', space=vmem, size = 0x2000, scoped, tag = 'input window, operand 1, single buffered']
    #allocation7 [shape = 's32[1]{0}', space=sflag, size = 0x4, scoped, tag = 'scoped memory for tpu_custom_call.1']
    #allocation8 [shape = 'u8[512]{0}', space=smem, size = 0x200, scoped, tag = 'output window, operand 0, single buffered']
    %8 = vsyncpa [#allocation4], 0
    %9 = vsyncpa [#allocation7], 0
    %10 = vsyncpa [#allocation5], 0
    // Predicated region
    $region2: #{tpu_custom_call.1} parent=1 // pred_check
      _
    $region3: #{tpu_custom_call.1} parent=1 // pred_check_branch
      %12 = sbr.rel (0) target = $region5
    $region4: #{tpu_custom_call.1} parent=1 // pred_region
      %s13 = sadd.s32 0, 0
      %s15 = ssub.s32 256, 256
      %16 = vsyncadd [#allocation4], %s15
      %s17 = smul.addr %s13, 2
      %s18 = smul.addr %s17, 128
      %s19 = scalar_lea.hbm %s0, %s18
      %s21 = sshll.u32 [#allocation3], 4
      %s22 = int_to_ptr.vmem [resolvable:$true] %s21
      %24 = dma.hbm_to_vmem [thread:$0]  %s19, 256, %s22, [#allocation4]
    $region5: #{tpu_custom_call.1} parent=1 // pred_fallthru
      _
    // Predicated region
    $region6: #{tpu_custom_call.1} parent=1 // pred_check
      _
    $region7: #{tpu_custom_call.1} parent=1 // pred_check_branch
      %26 = sbr.rel (0) target = $region9
    $region8: #{tpu_custom_call.1} parent=1 // pred_region
      %s27 = sadd.s32 0, 0
      %s29 = ssub.s32 256, 256
      %30 = vsyncadd [#allocation7], %s29
      %s31 = smul.addr %s27, 2
      %s32 = smul.addr %s31, 128
      %s33 = scalar_lea.hbm %s1, %s32
      %s35 = sshll.u32 [#allocation6], 4
      %s36 = int_to_ptr.vmem [resolvable:$true] %s35
      %38 = dma.hbm_to_vmem [thread:$0]  %s33, 256, %s36, [#allocation7]
    $region9: #{tpu_custom_call.1} parent=1 // pred_fallthru
      _
    // Predicated region
    $region10: #{tpu_custom_call.1} parent=1 // pred_check
      _
    $region11: #{tpu_custom_call.1} parent=1 // pred_check_branch
      %40 = sbr.rel (0) target = $region13
    $region12: #{tpu_custom_call.1} parent=1 // pred_region
      %s41 = sadd.s32 0, 0
      %p42 = scmp.lt.s32.totalorder %s41, 0
      %s43 = scalar_select %p42, %s41, 0
      %s44 = smul.addr %s43, 8
      %s45 = scalar_lea.vmem %s2, %s44
      %s46 = sadd.s32 0, 0
    $region13: #{tpu_custom_call.1} parent=1 // pred_fallthru
      _
    // Predicated region
    $region14: #{tpu_custom_call.1} parent=1 // pred_check
      _
    $region15: #{tpu_custom_call.1} parent=1 // pred_check_branch
      %48 = sbr.rel (0) target = $region17
    $region16: #{tpu_custom_call.1} parent=1 // pred_region
      %49 = dma.done [#allocation4], 256
    $region17: #{tpu_custom_call.1} parent=1 // pred_fallthru
      _
    // Predicated region
    $region18: #{tpu_custom_call.1} parent=1 // pred_check
      _
    $region19: #{tpu_custom_call.1} parent=1 // pred_check_branch
      %51 = sbr.rel (0) target = $region21
    $region20: #{tpu_custom_call.1} parent=1 // pred_region
      %52 = dma.done [#allocation7], 256
    $region21: #{tpu_custom_call.1} parent=1 // pred_fallthru
      _
    %s53 = sadd.s32 0, 0
    %p54 = scmp.lt.s32.totalorder %s53, 0
    %s55 = scalar_select %p54, %s53, 0
    %s56 = smul.addr %s55, 8
    %s57 = scalar_lea.vmem %s2, %s56
    %s58 = sadd.s32 0, 0
    %s59 = sadd.s32 0, 0
    %s60 = sadd.s32 0, 0
    %p61 = scmp.lt.s32.totalorder %s60, 0
    %s62 = scalar_select %p61, %s60, 0
    %s63 = smul.addr %s62, 8
    %s64 = scalar_lea.vmem %s2, %s63
    %s65 = sadd.s32 0, 0
    %p66 = scmp.eq.s32.totalorder 0, 0
    // Predicated region
    $region22: #{tpu_custom_call.1} parent=1 // pred_check
      %p67 = pneg %p66
    $region23: #{tpu_custom_call.1} parent=1 // pred_check_branch
      %69 = sbr.rel (%p67) target = $region25
    $region24: #{tpu_custom_call.1} parent=1 // pred_region
      %70 = vst [vmem:[#allocation2] sm:$0xff] 0.0
      %71 = vst [vmem:[#allocation2 + $0x8] sm:$0xff] 0.0
    $region25: #{tpu_custom_call.1} parent=1 // pred_fallthru
      _
    %v72 = vld [vmem:[#allocation3] sm:$0xff]
    %v73 = vld [vmem:[#allocation3 + $0x8] sm:$0xff]
    %v74 = vld [vmem:[#allocation6] sm:$0xff]
    %v75 = vld [vmem:[#allocation6 + $0x8] sm:$0xff]
    %v76 = vsub.f32 %v72, %v74
    %v77 = vsub.f32 %v73, %v75
    %v78 = vmul.f32 %v76, %v76
    %v79 = vmul.f32 %v77, %v77
    %v80 = vld [vmem:[%s64] sm:$0xff]
    %82 = vset.pattern.permute.xlu0 0
    %83 = vperm.xlu0 %82, %v80
    %v84 = vpop.permute.xlu0 %83
    %v86 = vmul.f32 %v78, %v84
    %v87 = vmul.f32 %v79, %v84
    %v88 = vadd.f32 %v86, 0.0
    %v89 = vadd.f32 %v87, 0.0
    %v90 = vld [vmem:[#allocation2] sm:$0xff]
    %v91 = vld [vmem:[#allocation2 + $0x8] sm:$0xff]
    %v92 = vadd.f32 %v90, %v88
    %v93 = vadd.f32 %v91, %v89
    %94 = vst [vmem:[#allocation2] sm:$0xff] %v92
    %95 = vst [vmem:[#allocation2 + $0x8] sm:$0xff] %v93
    // Predicated region
    $region26: #{tpu_custom_call.1} parent=1 // pred_check
      %p96 = pneg %p66
    $region27: #{tpu_custom_call.1} parent=1 // pred_check_branch
      %98 = sbr.rel (%p96) target = $region29
    $region28: #{tpu_custom_call.1} parent=1 // pred_region
      %v99 = vld [vmem:[#allocation2] sm:$0xff]
      %v100 = vld [vmem:[#allocation2 + $0x8] sm:$0xff]
      %v101 = vadd.f32 %v99, %v100
      %102 = vadd.xlane.f32.xlu0 %v101
      %v103 = vpop.xlane.xlu0 %102
      %v104 = vrot.slane %v103, 4
      %v105 = vadd.f32 %v103, %v104
      %v106 = vrot.slane %v105, 2
      %v107 = vadd.f32 %v105, %v106
      %v108 = vrot.slane %v107, 1
      %v109 = vadd.f32 %v107, %v108
      %s110 = vtos %v109
      %s111 = smul.f32 %s110, 0.00012207031
      %s112 = scalar_lea.smem [#allocation8], 0
      %113 = sst [smem:[%s112]] %s111
    $region29: #{tpu_custom_call.1} parent=1 // pred_fallthru
      _
    // Predicated region
    $region30: #{tpu_custom_call.1} parent=1 // pred_check
      _
    $region31: #{tpu_custom_call.1} parent=1 // pred_check_branch
      %115 = sbr.rel (0) target = $region33
    $region32: #{tpu_custom_call.1} parent=1 // pred_region
      %s117 = ssub.s32 16, 16
      %118 = vsyncadd [#allocation5], %s117
      %121 = dma.smem_to_hbm [#allocation8], 16, %s3, [#allocation5]
    $region33: #{tpu_custom_call.1} parent=1 // pred_fallthru
      _
    // Predicated region
    $region34: #{tpu_custom_call.1} parent=1 // pred_check
      _
    $region35: #{tpu_custom_call.1} parent=1 // pred_check_branch
      %123 = sbr.rel (0) target = $region37
    $region36: #{tpu_custom_call.1} parent=1 // pred_region
      %124 = dma.done [#allocation5], 16
    $region37: #{tpu_custom_call.1} parent=1 // pred_fallthru
      _
    %125 = sfence
    %126 = vsyncpa [#allocation4], 1
    %127 = vsyncpa [#allocation7], 1
    %128 = vsyncpa [#allocation5], 1

</llo_original>
